<compile_context>
chip_gen: v5e
topology: v5e:2x2
jax: 0.10.0
libtpu: 0.0.40
codegen_flags: <defaults>
</compile_context>

<pallas_src>
import functools

import jax
import jax.numpy as jnp
from jax.experimental import pallas as pl
from jax.experimental.pallas import tpu as pltpu

# ----------------------------- configuration --------------------------------
ROI_SIZE = 8
FLAT_SIZE = ROI_SIZE * ROI_SIZE          # input_x_c (embed_offset == False)
HIDDEN = 256
NUM_MID_LAYERS = 2                       # roi_layers - 2
NUM_LANDMARKS = 4
BATCH = 2
OUT_DIM = 2
OUT_PAD = 128                            # lane-dense padded output width
LEAKY_SLOPE = 0.01                       # nn.LeakyReLU default negative_slope


def _round_up(v, to):
    return ((v + to - 1) // to) * to


def _choose_tile_m(m):
    """Row-tile size: never larger than the (sublane-rounded) true M.

    * M is rounded up only to the 8-sublane granularity, NOT to a full MXU tile, so
      tiny instances (M=8 here) run one (8, ...) pass instead of 128/256 padded rows.
    * Cap at the MXU-friendly tile: 128 on v5* (128-wide MXU, also correct for v5p),
      256 on v6e/v7x (2x256^2 MXU).
    * On v7x (2 TensorCores/chip) split large M in two so the "parallel" grid axis
      has >= 2 points and both cores are used; rounded to 16 rows so bf16 blocks
      stay sublane-tile aligned.
    """
    m8 = max(8, _round_up(m, 8))
    try:
        kind = jax.devices()[0].device_kind.lower()
    except Exception:  # pragma: no cover - CPU emulation etc.
        kind = ""
    mxu_tile = 128 if "v5" in kind else 256
    if "v7" in kind and m8 > mxu_tile:
        return min(mxu_tile, _round_up(-(-m8 // 2), 16))
    return min(mxu_tile, m8)


# ------------------------------- kernel -------------------------------------
def _leaky_relu(x):
    return jnp.where(x > 0, x, LEAKY_SLOPE * x)


def _mlp_kernel(x_ref, w_inp_ref, b_inp_ref, w_mid_ref, b_mid_ref,
                w_oup_ref, b_oup_ref, o_ref, *, num_mid):
    """One M-tile of the MLP. Weights/activations are bf16, accumulation f32.

    x_ref:     (TM, FLAT_SIZE)               bf16
    w_inp_ref: (FLAT_SIZE, HIDDEN)           bf16    b_inp_ref: (1, HIDDEN)           f32
    w_mid_ref: (num_mid, HIDDEN, HIDDEN)     bf16    b_mid_ref: (num_mid, 1, HIDDEN)  f32
    w_oup_ref: (HIDDEN, OUT_PAD)             bf16    b_oup_ref: (1, OUT_PAD)          f32
    o_ref:     (TM, OUT_PAD)                 f32
    """
    h = jnp.dot(x_ref[...], w_inp_ref[...], preferred_element_type=jnp.float32)
    h = _leaky_relu(h + b_inp_ref[...])

    # static (unrolled) loop over the mid layers
    for l in range(num_mid):
        h = jnp.dot(h.astype(jnp.bfloat16), w_mid_ref[l],
                    preferred_element_type=jnp.float32)
        h = _leaky_relu(h + b_mid_ref[l])        # (1, HIDDEN) tile, broadcasts over rows

    out = jnp.dot(h.astype(jnp.bfloat16), w_oup_ref[...],
                  preferred_element_type=jnp.float32)
    o_ref[...] = (out + b_oup_ref[...]).astype(o_ref.dtype)


# ------------------------------- wrapper -------------------------------------
def heatmap_direct_regression_forward(x, params, *, tile_m=None):
    """Forward pass of Heatmap_Direct_Regression_Module.

    Args:
      x: (batch, num_landmarks, 1, roi_size, roi_size) float32
      params: dict with w_inp, b_inp, w_mid, b_mid, w_oup_pad, b_oup_pad
    Returns:
      (batch, num_landmarks, 2) float32
    """
    batch, num_landmarks = x.shape[0], x.shape[1]
    # bf16 activations: halves the x HBM->VMEM DMA; MXU operand is bf16 either way.
    x2d = x.reshape(-1, FLAT_SIZE).astype(jnp.bfloat16)   # (M, flat_size)
    m = x2d.shape[0]

    tm = _choose_tile_m(m) if tile_m is None else tile_m
    m_pad = _round_up(m, tm)
    if m_pad != m:
        x2d = jnp.pad(x2d, ((0, m_pad - m), (0, 0)))
    grid = (m_pad // tm,)

    # Grid-invariant weight/bias blocks: constant index_maps (DMA'd once, resident
    # across the grid) + single buffering (no pointless double-buffer).
    resident = dict(pipeline_mode=pl.Buffered(buffer_count=1))
    in_specs = [
        pl.BlockSpec((tm, FLAT_SIZE), lambda i: (i, 0)),                                  # x tile
        pl.BlockSpec((FLAT_SIZE, HIDDEN), lambda i: (0, 0), **resident),                  # w_inp
        pl.BlockSpec((1, HIDDEN), lambda i: (0, 0), **resident),                          # b_inp
        pl.BlockSpec((NUM_MID_LAYERS, HIDDEN, HIDDEN), lambda i: (0, 0, 0), **resident),  # w_mid
        pl.BlockSpec((NUM_MID_LAYERS, 1, HIDDEN), lambda i: (0, 0, 0), **resident),       # b_mid
        pl.BlockSpec((HIDDEN, OUT_PAD), lambda i: (0, 0), **resident),                    # w_oup
        pl.BlockSpec((1, OUT_PAD), lambda i: (0, 0), **resident),                         # b_oup
    ]
    out_specs = pl.BlockSpec((tm, OUT_PAD), lambda i: (i, 0))

    # Advisory cost estimate for the true (rounded) row count: weight-DMA dominated.
    per_row_flops = 2 * (FLAT_SIZE * HIDDEN
                         + NUM_MID_LAYERS * HIDDEN * HIDDEN
                         + HIDDEN * OUT_PAD)
    weight_bytes = 2 * (FLAT_SIZE * HIDDEN + NUM_MID_LAYERS * HIDDEN * HIDDEN
                        + HIDDEN * OUT_PAD) \
                   + 4 * (HIDDEN + NUM_MID_LAYERS * HIDDEN + OUT_PAD)
    cost = pl.CostEstimate(
        flops=m_pad * per_row_flops,
        transcendentals=0,
        bytes_accessed=weight_bytes + m_pad * FLAT_SIZE * 2 + m_pad * OUT_PAD * 4,
    )

    out2d = pl.pallas_call(
        functools.partial(_mlp_kernel, num_mid=NUM_MID_LAYERS),
        out_shape=jax.ShapeDtypeStruct((m_pad, OUT_PAD), jnp.float32),
        grid=grid,
        in_specs=in_specs,
        out_specs=out_specs,
        compiler_params=pltpu.CompilerParams(dimension_semantics=("parallel",)),
        cost_estimate=cost,
    )(
        x2d,
        params["w_inp"], params["b_inp"],
        params["w_mid"], params["b_mid"],
        params["w_oup_pad"], params["b_oup_pad"],
    )
    # Strip M padding (if any) and the lane padding of the 2-wide regression head.
    return out2d[:m, :OUT_DIM].reshape(batch, num_landmarks, OUT_DIM)


# --------------------------- parameter creation ------------------------------
def make_params(key):
    """Deterministic init mirroring init_weights: normal(std=0.001), zero biases.

    Weights stored in bf16 (halves the dominant HBM->VMEM DMA); biases in f32.
    fc_oup is zero-padded from OUT_DIM=2 to OUT_PAD=128 lanes for lane-dense stores.
    """
    k1, k2, k3 = jax.random.split(key, 3)
    w_inp = (0.001 * jax.random.normal(k1, (FLAT_SIZE, HIDDEN), jnp.float32)
             ).astype(jnp.bfloat16)
    b_inp = jnp.zeros((1, HIDDEN), jnp.float32)
    w_mid = (0.001 * jax.random.normal(k2, (NUM_MID_LAYERS, HIDDEN, HIDDEN), jnp.float32)
             ).astype(jnp.bfloat16)
    b_mid = jnp.zeros((NUM_MID_LAYERS, 1, HIDDEN), jnp.float32)
    w_oup = (0.001 * jax.random.normal(k3, (HIDDEN, OUT_DIM), jnp.float32)
             ).astype(jnp.bfloat16)
    b_oup = jnp.zeros((1, OUT_DIM), jnp.float32)
    w_oup_pad = jnp.zeros((HIDDEN, OUT_PAD), jnp.bfloat16).at[:, :OUT_DIM].set(w_oup)
    b_oup_pad = jnp.zeros((1, OUT_PAD), jnp.float32).at[:, :OUT_DIM].set(b_oup)
    return dict(w_inp=w_inp, b_inp=b_inp, w_mid=w_mid, b_mid=b_mid,
                w_oup_pad=w_oup_pad, b_oup_pad=b_oup_pad)


def reference_forward(x, params):
    """Pure-JAX reference with identical numerics (bf16 operands, f32 accumulate)."""
    h = x.reshape(-1, FLAT_SIZE).astype(jnp.bfloat16)
    h = jnp.dot(h, params["w_inp"], preferred_element_type=jnp.float32) + params["b_inp"]
    h = jnp.where(h > 0, h, LEAKY_SLOPE * h)
    for l in range(NUM_MID_LAYERS):
        h = jnp.dot(h.astype(jnp.bfloat16), params["w_mid"][l],
                    preferred_element_type=jnp.float32) + params["b_mid"][l]
        h = jnp.where(h > 0, h, LEAKY_SLOPE * h)
    out = jnp.dot(h.astype(jnp.bfloat16), params["w_oup_pad"],
                  preferred_element_type=jnp.float32) + params["b_oup_pad"]
    return out[:, :OUT_DIM].reshape(x.shape[0], x.shape[1], OUT_DIM)


# --------------------------------- main --------------------------------------
if __name__ == "__main__":
    key = jax.random.PRNGKey(0)
    kx, kp = jax.random.split(key)

    x = jax.random.normal(
        kx, (BATCH, NUM_LANDMARKS, 1, ROI_SIZE, ROI_SIZE), jnp.float32)
    params = make_params(kp)

    out = heatmap_direct_regression_forward(x, params)
    out = jax.block_until_ready(out)

    ref = jax.block_until_ready(reference_forward(x, params))
    assert out.shape == (BATCH, NUM_LANDMARKS, OUT_DIM), out.shape
    assert jnp.allclose(out, ref, atol=1e-5, rtol=2e-2), "mismatch vs reference"

    print("KERNEL_OK")
</pallas_src>

<mosaic_0001>
module attributes {stable_mosaic.version = 11 : i64} {
  func.func @_mlp_kernel(%arg0: i32, %arg1: memref<8x64xbf16, #tpu.memory_space<vmem>>, %arg2: memref<64x256xbf16, #tpu.memory_space<vmem>>, %arg3: memref<1x256xf32, #tpu.memory_space<vmem>>, %arg4: memref<2x256x256xbf16, #tpu.memory_space<vmem>>, %arg5: memref<2x1x256xf32, #tpu.memory_space<vmem>>, %arg6: memref<256x128xbf16, #tpu.memory_space<vmem>>, %arg7: memref<1x128xf32, #tpu.memory_space<vmem>>, %arg8: memref<8x128xf32, #tpu.memory_space<vmem>>) attributes {dimension_semantics = [#tpu.dimension_semantics<parallel>], iteration_bounds = array<i64: 1>, scalar_prefetch = 0 : i64, scratch_operands = 0 : i64, tpu.core_type = #tpu.core_type<tc>, window_params = [{transform_indices = @transform_0, window_bounds = array<i64: 8, 64>}, {pipeline_mode = #tpu.pipeline_mode<synchronous>, transform_indices = @transform_1, window_bounds = array<i64: 64, 256>}, {pipeline_mode = #tpu.pipeline_mode<synchronous>, transform_indices = @transform_2, window_bounds = array<i64: 1, 256>}, {pipeline_mode = #tpu.pipeline_mode<synchronous>, transform_indices = @transform_3, window_bounds = array<i64: 2, 256, 256>}, {pipeline_mode = #tpu.pipeline_mode<synchronous>, transform_indices = @transform_4, window_bounds = array<i64: 2, 1, 256>}, {pipeline_mode = #tpu.pipeline_mode<synchronous>, transform_indices = @transform_5, window_bounds = array<i64: 256, 128>}, {pipeline_mode = #tpu.pipeline_mode<synchronous>, transform_indices = @transform_6, window_bounds = array<i64: 1, 128>}, {transform_indices = @transform_7, window_bounds = array<i64: 8, 128>}]} {
    %c0 = arith.constant 0 : index
    %c0_0 = arith.constant 0 : index
    %0 = vector.load %arg1[%c0, %c0_0] : memref<8x64xbf16, #tpu.memory_space<vmem>>, vector<8x64xbf16>
    %c0_1 = arith.constant 0 : index
    %c0_2 = arith.constant 0 : index
    %1 = vector.load %arg2[%c0_1, %c0_2] : memref<64x256xbf16, #tpu.memory_space<vmem>>, vector<64x256xbf16>
    %cst = arith.constant dense<0.000000e+00> : vector<8x256xf32>
    %2 = tpu.matmul %0, %1, %cst {dimension_numbers = #tpu.dot_dimension_numbers<[1], [0], [0], [1], [0, 0, 1, 1], [], []>} : vector<8x64xbf16>, vector<64x256xbf16>, vector<8x256xf32> -> vector<8x256xf32>
    %c0_3 = arith.constant 0 : index
    %c0_4 = arith.constant 0 : index
    %3 = vector.load %arg3[%c0_3, %c0_4] : memref<1x256xf32, #tpu.memory_space<vmem>>, vector<1x256xf32>
    %4 = vector.broadcast %3 : vector<1x256xf32> to vector<8x256xf32>
    %5 = arith.addf %2, %4 : vector<8x256xf32>
    %cst_5 = arith.constant 0.000000e+00 : f32
    %6 = vector.broadcast %cst_5 : f32 to vector<8x256xf32>
    %7 = arith.cmpf ogt, %5, %6 : vector<8x256xf32>
    %cst_6 = arith.constant 0.00999999977 : f32
    %8 = vector.broadcast %cst_6 : f32 to vector<8x256xf32>
    %9 = arith.mulf %8, %5 : vector<8x256xf32>
    %10 = arith.select %7, %5, %9 : vector<8x256xi1>, vector<8x256xf32>
    %11 = arith.truncf %10 : vector<8x256xf32> to vector<8x256xbf16>
    %c0_7 = arith.constant 0 : index
    %c0_8 = arith.constant 0 : index
    %c0_9 = arith.constant 0 : index
    %12 = vector.load %arg4[%c0_7, %c0_8, %c0_9] : memref<2x256x256xbf16, #tpu.memory_space<vmem>>, vector<1x256x256xbf16>
    %13 = vector.shape_cast %12 : vector<1x256x256xbf16> to vector<256x256xbf16>
    %cst_10 = arith.constant dense<0.000000e+00> : vector<8x256xf32>
    %14 = tpu.matmul %11, %13, %cst_10 {dimension_numbers = #tpu.dot_dimension_numbers<[1], [0], [0], [1], [0, 0, 1, 1], [], []>} : vector<8x256xbf16>, vector<256x256xbf16>, vector<8x256xf32> -> vector<8x256xf32>
    %c0_11 = arith.constant 0 : index
    %c0_12 = arith.constant 0 : index
    %c0_13 = arith.constant 0 : index
    %15 = vector.load %arg5[%c0_11, %c0_12, %c0_13] : memref<2x1x256xf32, #tpu.memory_space<vmem>>, vector<1x1x256xf32>
    %16 = vector.shape_cast %15 : vector<1x1x256xf32> to vector<1x256xf32>
    %17 = vector.broadcast %16 : vector<1x256xf32> to vector<8x256xf32>
    %18 = arith.addf %14, %17 : vector<8x256xf32>
    %cst_14 = arith.constant 0.000000e+00 : f32
    %19 = vector.broadcast %cst_14 : f32 to vector<8x256xf32>
    %20 = arith.cmpf ogt, %18, %19 : vector<8x256xf32>
    %cst_15 = arith.constant 0.00999999977 : f32
    %21 = vector.broadcast %cst_15 : f32 to vector<8x256xf32>
    %22 = arith.mulf %21, %18 : vector<8x256xf32>
    %23 = arith.select %20, %18, %22 : vector<8x256xi1>, vector<8x256xf32>
    %24 = arith.truncf %23 : vector<8x256xf32> to vector<8x256xbf16>
    %c1 = arith.constant 1 : index
    %c0_16 = arith.constant 0 : index
    %c0_17 = arith.constant 0 : index
    %25 = vector.load %arg4[%c1, %c0_16, %c0_17] : memref<2x256x256xbf16, #tpu.memory_space<vmem>>, vector<1x256x256xbf16>
    %26 = vector.shape_cast %25 : vector<1x256x256xbf16> to vector<256x256xbf16>
    %cst_18 = arith.constant dense<0.000000e+00> : vector<8x256xf32>
    %27 = tpu.matmul %24, %26, %cst_18 {dimension_numbers = #tpu.dot_dimension_numbers<[1], [0], [0], [1], [0, 0, 1, 1], [], []>} : vector<8x256xbf16>, vector<256x256xbf16>, vector<8x256xf32> -> vector<8x256xf32>
    %c1_19 = arith.constant 1 : index
    %c0_20 = arith.constant 0 : index
    %c0_21 = arith.constant 0 : index
    %28 = vector.load %arg5[%c1_19, %c0_20, %c0_21] : memref<2x1x256xf32, #tpu.memory_space<vmem>>, vector<1x1x256xf32>
    %29 = vector.shape_cast %28 : vector<1x1x256xf32> to vector<1x256xf32>
    %30 = vector.broadcast %29 : vector<1x256xf32> to vector<8x256xf32>
    %31 = arith.addf %27, %30 : vector<8x256xf32>
    %cst_22 = arith.constant 0.000000e+00 : f32
    %32 = vector.broadcast %cst_22 : f32 to vector<8x256xf32>
    %33 = arith.cmpf ogt, %31, %32 : vector<8x256xf32>
    %cst_23 = arith.constant 0.00999999977 : f32
    %34 = vector.broadcast %cst_23 : f32 to vector<8x256xf32>
    %35 = arith.mulf %34, %31 : vector<8x256xf32>
    %36 = arith.select %33, %31, %35 : vector<8x256xi1>, vector<8x256xf32>
    %37 = arith.truncf %36 : vector<8x256xf32> to vector<8x256xbf16>
    %c0_24 = arith.constant 0 : index
    %c0_25 = arith.constant 0 : index
    %38 = vector.load %arg6[%c0_24, %c0_25] : memref<256x128xbf16, #tpu.memory_space<vmem>>, vector<256x128xbf16>
    %cst_26 = arith.constant dense<0.000000e+00> : vector<8x128xf32>
    %39 = tpu.matmul %37, %38, %cst_26 {dimension_numbers = #tpu.dot_dimension_numbers<[1], [0], [0], [1], [0, 0, 1, 1], [], []>} : vector<8x256xbf16>, vector<256x128xbf16>, vector<8x128xf32> -> vector<8x128xf32>
    %c0_27 = arith.constant 0 : index
    %c0_28 = arith.constant 0 : index
    %40 = vector.load %arg7[%c0_27, %c0_28] : memref<1x128xf32, #tpu.memory_space<vmem>>, vector<1x128xf32>
    %41 = vector.broadcast %40 : vector<1x128xf32> to vector<8x128xf32>
    %42 = arith.addf %39, %41 : vector<8x128xf32>
    %c0_29 = arith.constant 0 : index
    %c0_30 = arith.constant 0 : index
    %43 = vector.load %arg8[%c0_29, %c0_30] : memref<8x128xf32, #tpu.memory_space<vmem>>, vector<8x128xf32>
    tpu.vector_store %arg8[%c0_29, %c0_30], %42 {strides = array<i32>} : memref<8x128xf32, #tpu.memory_space<vmem>>, vector<8x128xf32>,
    return
  }
  func.func @transform_0(%arg0: i32) -> (i32, i32) {
    %c0_i32 = arith.constant 0 : i32
    %c0_i32_0 = arith.constant 0 : i32
    return %arg0, %c0_i32 : i32, i32
  }
  func.func @transform_1(%arg0: i32) -> (i32, i32) {
    %c0_i32 = arith.constant 0 : i32
    %c0_i32_0 = arith.constant 0 : i32
    %c0_i32_1 = arith.constant 0 : i32
    return %c0_i32, %c0_i32_0 : i32, i32
  }
  func.func @transform_2(%arg0: i32) -> (i32, i32) {
    %c0_i32 = arith.constant 0 : i32
    %c0_i32_0 = arith.constant 0 : i32
    %c0_i32_1 = arith.constant 0 : i32
    return %c0_i32, %c0_i32_0 : i32, i32
  }
  func.func @transform_3(%arg0: i32) -> (i32, i32, i32) {
    %c0_i32 = arith.constant 0 : i32
    %c0_i32_0 = arith.constant 0 : i32
    %c0_i32_1 = arith.constant 0 : i32
    %c0_i32_2 = arith.constant 0 : i32
    return %c0_i32, %c0_i32_0, %c0_i32_1 : i32, i32, i32
  }
  func.func @transform_4(%arg0: i32) -> (i32, i32, i32) {
    %c0_i32 = arith.constant 0 : i32
    %c0_i32_0 = arith.constant 0 : i32
    %c0_i32_1 = arith.constant 0 : i32
    %c0_i32_2 = arith.constant 0 : i32
    return %c0_i32, %c0_i32_0, %c0_i32_1 : i32, i32, i32
  }
  func.func @transform_5(%arg0: i32) -> (i32, i32) {
    %c0_i32 = arith.constant 0 : i32
    %c0_i32_0 = arith.constant 0 : i32
    %c0_i32_1 = arith.constant 0 : i32
    return %c0_i32, %c0_i32_0 : i32, i32
  }
  func.func @transform_6(%arg0: i32) -> (i32, i32) {
    %c0_i32 = arith.constant 0 : i32
    %c0_i32_0 = arith.constant 0 : i32
    %c0_i32_1 = arith.constant 0 : i32
    return %c0_i32, %c0_i32_0 : i32, i32
  }
  func.func @transform_7(%arg0: i32) -> (i32, i32) {
    %c0_i32 = arith.constant 0 : i32
    %c0_i32_0 = arith.constant 0 : i32
    return %arg0, %c0_i32 : i32, i32
  }
}

</mosaic_0001>

<llo_original>
// kernel: tpu_custom_call.1
$region0: #{tpu_custom_call.1}
  #allocation0 [shape = 'u32[]', space=smem, size = 0x4, offset = 0x4, fixed_abs, tag = 'smem constant byte address 0x4 - core index']
  #allocation1 [shape = 'u32[72,128]{1,0:T(1,128)}', space=vmem, size = 0x9000, scoped, tag = 'internal scratch']
  %s0 = inlined_call_operand.hbm [shape: bf16[8,64], index: 0, kind: input, shape index: {}]
  %s1 = inlined_call_operand.hbm [shape: bf16[64,256], index: 1, kind: input, shape index: {}]
  %s2 = inlined_call_operand.hbm [shape: f32[1,256], index: 2, kind: input, shape index: {}]
  %s3 = inlined_call_operand.hbm [shape: bf16[2,256,256], index: 3, kind: input, shape index: {}]
  %s4 = inlined_call_operand.hbm [shape: f32[2,1,256], index: 4, kind: input, shape index: {}]
  %s5 = inlined_call_operand.hbm [shape: bf16[256,128], index: 5, kind: input, shape index: {}]
  %s6 = inlined_call_operand.vmem [shape: f32[1,128], index: 6, kind: input, shape index: {}]
  %s7 = inlined_call_operand.hbm [shape: f32[8,128], index: 7, kind: output, shape index: {}]
  %s8 = sld [smem:[#allocation0]]
  $region62: #{tpu_custom_call.1} parent=0
    _
  %s10 = ssub.s32 1, %s8
  %s11 = scalar_select 0, %s10, %s8
  $region1: #{tpu_custom_call.1} parent=0
    #allocation2 [shape = 'u8[2048]{0}', space=vmem, size = 0x800, scoped, tag = 'input window, operand 0, single buffered']
    #allocation3 [shape = 's32[1]{0}', space=sflag, size = 0x4, scoped, tag = 'scoped memory for tpu_custom_call.1']
    #allocation4 [shape = 's32[1]{0}', space=sflag, size = 0x4, scoped, tag = 'scoped memory for tpu_custom_call.1']
    #allocation5 [shape = 'u8[32768]{0}', space=vmem, size = 0x8000, scoped, tag = 'input window, operand 1, single buffered']
    #allocation6 [shape = 's32[1]{0}', space=sflag, size = 0x4, scoped, tag = 'scoped memory for tpu_custom_call.1']
    #allocation7 [shape = 'u8[1024]{0}', space=vmem, size = 0x400, scoped, tag = 'input window, operand 2, single buffered']
    #allocation8 [shape = 'u8[262144]{0}', space=vmem, size = 0x40000, scoped, tag = 'input window, operand 3, single buffered']
    #allocation9 [shape = 's32[1]{0}', space=sflag, size = 0x4, scoped, tag = 'scoped memory for tpu_custom_call.1']
    #allocation10 [shape = 'u8[2048]{0}', space=vmem, size = 0x800, scoped, tag = 'input window, operand 4, single buffered']
    #allocation11 [shape = 'u8[65536]{0}', space=vmem, size = 0x10000, scoped, tag = 'input window, operand 5, single buffered']
    #allocation12 [shape = 's32[1]{0}', space=sflag, size = 0x4, scoped, tag = 'scoped memory for tpu_custom_call.1']
    #allocation13 [shape = 'u8[4096]{0}', space=vmem, size = 0x1000, scoped, tag = 'output window, operand 0, single buffered']
    %12 = vsyncpa [#allocation3], 0
    %13 = vsyncpa [#allocation6], 0
    %14 = vsyncpa [#allocation9], 0
    %15 = vsyncpa [#allocation12], 0
    %16 = vsyncpa [#allocation4], 0
    // Predicated region
    $region2: #{tpu_custom_call.1} parent=1 // pred_check
      _
    $region3: #{tpu_custom_call.1} parent=1 // pred_check_branch
      %18 = sbr.rel (0) target = $region5
    $region4: #{tpu_custom_call.1} parent=1 // pred_region
      %20 = vsyncadd [#allocation3], 0
      %s22 = sshll.u32 %s0, 4
      %s23 = int_to_ptr.hbm [resolvable:$true] %s22
      %s24 = sshll.u32 [#allocation2], 4
      %s25 = int_to_ptr.vmem [resolvable:$true] %s24
      %27 = dma.hbm_to_vmem [thread:$0]  %s23, 64, %s25, [#allocation3]
    $region5: #{tpu_custom_call.1} parent=1 // pred_fallthru
      _
    // Predicated region
    $region6: #{tpu_custom_call.1} parent=1 // pred_check
      _
    $region7: #{tpu_custom_call.1} parent=1 // pred_check_branch
      %29 = sbr.rel (0) target = $region9
    $region8: #{tpu_custom_call.1} parent=1 // pred_region
      %31 = vsyncadd [#allocation6], 0
      %s32 = sshll.u32 %s1, 4
      %s33 = int_to_ptr.hbm [resolvable:$true] %s32
      %s34 = sshll.u32 [#allocation5], 4
      %s35 = int_to_ptr.vmem [resolvable:$true] %s34
      %40 = dma.hbm_to_vmem [thread:$0]  %s33, 1024, %s35, [#allocation6], 128, 128, 8
    $region9: #{tpu_custom_call.1} parent=1 // pred_fallthru
      _
    // Predicated region
    $region10: #{tpu_custom_call.1} parent=1 // pred_check
      _
    $region11: #{tpu_custom_call.1} parent=1 // pred_check_branch
      %42 = sbr.rel (0) target = $region13
    $region12: #{tpu_custom_call.1} parent=1 // pred_region
      %44 = vsyncadd [#allocation6], 0
      %s46 = sshll.u32 %s2, 4
      %s47 = int_to_ptr.hbm [resolvable:$true] %s46
      %s48 = sshll.u32 [#allocation7], 4
      %s49 = int_to_ptr.vmem [resolvable:$true] %s48
      %51 = dma.hbm_to_vmem [thread:$0]  %s47, 32, %s49, [#allocation6]
    $region13: #{tpu_custom_call.1} parent=1 // pred_fallthru
      _
    // Predicated region
    $region14: #{tpu_custom_call.1} parent=1 // pred_check
      _
    $region15: #{tpu_custom_call.1} parent=1 // pred_check_branch
      %53 = sbr.rel (0) target = $region17
    $region16: #{tpu_custom_call.1} parent=1 // pred_region
      %55 = vsyncadd [#allocation9], 0
      %s56 = sshll.u32 %s3, 4
      %s57 = int_to_ptr.hbm [resolvable:$true] %s56
      %s58 = sshll.u32 [#allocation8], 4
      %s59 = int_to_ptr.vmem [resolvable:$true] %s58
      %64 = dma.hbm_to_vmem [thread:$0]  %s57, 8192, %s59, [#allocation9], 128, 128, 8
    $region17: #{tpu_custom_call.1} parent=1 // pred_fallthru
      _
    // Predicated region
    $region18: #{tpu_custom_call.1} parent=1 // pred_check
      _
    $region19: #{tpu_custom_call.1} parent=1 // pred_check_branch
      %66 = sbr.rel (0) target = $region21
    $region20: #{tpu_custom_call.1} parent=1 // pred_region
      %68 = vsyncadd [#allocation9], 0
      %s69 = sshll.u32 %s4, 4
      %s70 = int_to_ptr.hbm [resolvable:$true] %s69
      %s71 = sshll.u32 [#allocation10], 4
      %s72 = int_to_ptr.vmem [resolvable:$true] %s71
      %77 = dma.hbm_to_vmem [thread:$0]  %s70, 64, %s72, [#allocation9], 32, 32, 2
    $region21: #{tpu_custom_call.1} parent=1 // pred_fallthru
      _
    // Predicated region
    $region22: #{tpu_custom_call.1} parent=1 // pred_check
      _
    $region23: #{tpu_custom_call.1} parent=1 // pred_check_branch
      %79 = sbr.rel (0) target = $region25
    $region24: #{tpu_custom_call.1} parent=1 // pred_region
      %81 = vsyncadd [#allocation12], 0
      %s82 = sshll.u32 %s5, 4
      %s83 = int_to_ptr.hbm [resolvable:$true] %s82
      %s84 = sshll.u32 [#allocation11], 4
      %s85 = int_to_ptr.vmem [resolvable:$true] %s84
      %90 = dma.hbm_to_vmem [thread:$0]  %s83, 2048, %s85, [#allocation12], 64, 64, 4
    $region25: #{tpu_custom_call.1} parent=1 // pred_fallthru
      _
    // Predicated region
    $region26: #{tpu_custom_call.1} parent=1 // pred_check
      _
    $region27: #{tpu_custom_call.1} parent=1 // pred_check_branch
      %92 = sbr.rel (0) target = $region29
    $region28: #{tpu_custom_call.1} parent=1 // pred_region
      _
    $region29: #{tpu_custom_call.1} parent=1 // pred_fallthru
      _
    // Predicated region
    $region30: #{tpu_custom_call.1} parent=1 // pred_check
      _
    $region31: #{tpu_custom_call.1} parent=1 // pred_check_branch
      %94 = sbr.rel (0) target = $region33
    $region32: #{tpu_custom_call.1} parent=1 // pred_region
      %96 = dma.done [#allocation3], 64
    $region33: #{tpu_custom_call.1} parent=1 // pred_fallthru
      _
    // Predicated region
    $region34: #{tpu_custom_call.1} parent=1 // pred_check
      _
    $region35: #{tpu_custom_call.1} parent=1 // pred_check_branch
      %98 = sbr.rel (0) target = $region37
    $region36: #{tpu_custom_call.1} parent=1 // pred_region
      %100 = dma.done [#allocation6], 1024
    $region37: #{tpu_custom_call.1} parent=1 // pred_fallthru
      _
    // Predicated region
    $region38: #{tpu_custom_call.1} parent=1 // pred_check
      _
    $region39: #{tpu_custom_call.1} parent=1 // pred_check_branch
      %102 = sbr.rel (0) target = $region41
    $region40: #{tpu_custom_call.1} parent=1 // pred_region
      %104 = dma.done [#allocation6], 32
    $region41: #{tpu_custom_call.1} parent=1 // pred_fallthru
      _
    // Predicated region
    $region42: #{tpu_custom_call.1} parent=1 // pred_check
      _
    $region43: #{tpu_custom_call.1} parent=1 // pred_check_branch
      %106 = sbr.rel (0) target = $region45
    $region44: #{tpu_custom_call.1} parent=1 // pred_region
      %108 = dma.done [#allocation9], 8192
    $region45: #{tpu_custom_call.1} parent=1 // pred_fallthru
      _
    // Predicated region
    $region46: #{tpu_custom_call.1} parent=1 // pred_check
      _
    $region47: #{tpu_custom_call.1} parent=1 // pred_check_branch
      %110 = sbr.rel (0) target = $region49
    $region48: #{tpu_custom_call.1} parent=1 // pred_region
      %112 = dma.done [#allocation9], 64
    $region49: #{tpu_custom_call.1} parent=1 // pred_fallthru
      _
    // Predicated region
    $region50: #{tpu_custom_call.1} parent=1 // pred_check
      _
    $region51: #{tpu_custom_call.1} parent=1 // pred_check_branch
      %114 = sbr.rel (0) target = $region53
    $region52: #{tpu_custom_call.1} parent=1 // pred_region
      %116 = dma.done [#allocation12], 2048
    $region53: #{tpu_custom_call.1} parent=1 // pred_fallthru
      _
    %v118 = vld [vmem:[#allocation2] sm:$0xf]
    %v119 = vld [vmem:[#allocation5] sm:$0xff]
    %v120 = vld [vmem:[#allocation5 + $0x8] sm:$0xff]
    %v121 = vld [vmem:[#allocation5 + $0x10] sm:$0xff]
    %v122 = vld [vmem:[#allocation5 + $0x18] sm:$0xff]
    %v123 = vld [vmem:[#allocation5 + $0x20] sm:$0xff]
    %v124 = vld [vmem:[#allocation5 + $0x28] sm:$0xff]
    %v125 = vld [vmem:[#allocation5 + $0x30] sm:$0xff]
    %v126 = vld [vmem:[#allocation5 + $0x38] sm:$0xff]
    %v127 = vld [vmem:[#allocation7] sm:$0x3]
    %v129 = vperm.slane %v127, 0
    %v130 = vperm.slane %v127, 1
    %v141 = vunpack.c.l.b16 %v119
    %v142 = vunpack.c.h.b16 %v119
    %v143 = vunpack.c.l.b16 %v120
    %v144 = vunpack.c.h.b16 %v120
    %v145 = vunpack.c.l.b16 %v121
    %v146 = vunpack.c.h.b16 %v121
    %v147 = vunpack.c.l.b16 %v122
    %v148 = vunpack.c.h.b16 %v122
    %v149 = vunpack.c.l.b16 %v123
    %v150 = vunpack.c.h.b16 %v123
    %v151 = vunpack.c.l.b16 %v124
    %v152 = vunpack.c.h.b16 %v124
    %v153 = vunpack.c.l.b16 %v125
    %v154 = vunpack.c.h.b16 %v125
    %v155 = vunpack.c.l.b16 %v126
    %v156 = vunpack.c.h.b16 %v126
    %v157 = vpack.c.b16 %v143, %v141
    %v158 = vpack.c.b16 %v144, %v142
    %v159 = vpack.c.b16 %v147, %v145
    %v160 = vpack.c.b16 %v148, %v146
    %v161 = vpack.c.b16 %v151, %v149
    %v162 = vpack.c.b16 %v152, %v150
    %v163 = vpack.c.b16 %v155, %v153
    %v164 = vpack.c.b16 %v156, %v154
    %vm173 = vcmask 523264
    %v175 = vsel %vm173, %v118, 0
    %177 = vmatpush.bf16.msra.mxu0 0
    %178 = vmatpush.bf16.msra.mxu0 0
    %179 = vmatpush.bf16.msra.mxu0 0
    %180 = vmatpush.bf16.msra.mxu0 0
    %181 = vmatpush.bf16.msra.mxu0 %v163
    %182 = vmatpush.bf16.msra.mxu0 %v161
    %183 = vmatpush.bf16.msra.mxu0 %v159
    %184 = vmatpush.bf16.msra.mxu0 %v157
    %185 = vmatmul.bf16.gmra.mxu0 %v175
    %v186 = vpop.f32.mrf.mxu0
    %v187 = vadd.f32 %v129, %v186
    %v188 = vpop.f32.mrf.mxu0
    %189 = vdwg.mxu0
    %190 = vmatpush.bf16.msra.mxu0 0
    %191 = vmatpush.bf16.msra.mxu0 0
    %192 = vmatpush.bf16.msra.mxu0 0
    %193 = vmatpush.bf16.msra.mxu0 0
    %194 = vmatpush.bf16.msra.mxu0 %v164
    %195 = vmatpush.bf16.msra.mxu0 %v162
    %196 = vmatpush.bf16.msra.mxu0 %v160
    %197 = vmatpush.bf16.msra.mxu0 %v158
    %198 = vmatmul.bf16.gmra.mxu0 %v175
    %v199 = vpop.f32.mrf.mxu0
    %v200 = vadd.f32 %v130, %v199
    %v201 = vpop.f32.mrf.mxu0
    %202 = vdwg.mxu0
    %vm203 = vcmp.gt.f32.partialorder %v187, 0.0
    %vm204 = vcmp.gt.f32.partialorder %v200, 0.0
    %v205 = vmul.f32 %v187, 0.01
    %v206 = vmul.f32 %v200, 0.01
    %v207 = vsel %vm203, %v187, %v205
    %v208 = vsel %vm204, %v200, %v206
    %v209 = vpack.c.bf16 %v207, %v207
    %v210 = vpack.c.bf16 %v208, %v208
    %v211 = vld [vmem:[#allocation8] sm:$0xff]
    %v212 = vld [vmem:[#allocation8 + $0x8] sm:$0xff]
    %v213 = vld [vmem:[#allocation8 + $0x10] sm:$0xff]
    %v214 = vld [vmem:[#allocation8 + $0x18] sm:$0xff]
    %v215 = vld [vmem:[#allocation8 + $0x20] sm:$0xff]
    %v216 = vld [vmem:[#allocation8 + $0x28] sm:$0xff]
    %v217 = vld [vmem:[#allocation8 + $0x30] sm:$0xff]
    %v218 = vld [vmem:[#allocation8 + $0x38] sm:$0xff]
    %v219 = vld [vmem:[#allocation8 + $0x40] sm:$0xff]
    %v220 = vld [vmem:[#allocation8 + $0x48] sm:$0xff]
    %v221 = vld [vmem:[#allocation8 + $0x50] sm:$0xff]
    %v222 = vld [vmem:[#allocation8 + $0x58] sm:$0xff]
    %v223 = vld [vmem:[#allocation8 + $0x60] sm:$0xff]
    %v224 = vld [vmem:[#allocation8 + $0x68] sm:$0xff]
    %v225 = vld [vmem:[#allocation8 + $0x70] sm:$0xff]
    %v226 = vld [vmem:[#allocation8 + $0x78] sm:$0xff]
    %v227 = vld [vmem:[#allocation8 + $0x80] sm:$0xff]
    %v228 = vld [vmem:[#allocation8 + $0x88] sm:$0xff]
    %v229 = vld [vmem:[#allocation8 + $0x90] sm:$0xff]
    %v230 = vld [vmem:[#allocation8 + $0x98] sm:$0xff]
    %v231 = vld [vmem:[#allocation8 + $0xa0] sm:$0xff]
    %v232 = vld [vmem:[#allocation8 + $0xa8] sm:$0xff]
    %v233 = vld [vmem:[#allocation8 + $0xb0] sm:$0xff]
    %v234 = vld [vmem:[#allocation8 + $0xb8] sm:$0xff]
    %v235 = vld [vmem:[#allocation8 + $0xc0] sm:$0xff]
    %v236 = vld [vmem:[#allocation8 + $0xc8] sm:$0xff]
    %v237 = vld [vmem:[#allocation8 + $0xd0] sm:$0xff]
    %v238 = vld [vmem:[#allocation8 + $0xd8] sm:$0xff]
    %v239 = vld [vmem:[#allocation8 + $0xe0] sm:$0xff]
    %v240 = vld [vmem:[#allocation8 + $0xe8] sm:$0xff]
    %v241 = vld [vmem:[#allocation8 + $0xf0] sm:$0xff]
    %v242 = vld [vmem:[#allocation8 + $0xf8] sm:$0xff]
    %v243 = vld [vmem:[#allocation10] sm:$0x3]
    %v245 = vperm.slane %v243, 0
    %v246 = vperm.slane %v243, 1
    %v281 = vunpack.c.l.b16 %v211
    %v282 = vunpack.c.h.b16 %v211
    %v283 = vunpack.c.l.b16 %v212
    %v284 = vunpack.c.h.b16 %v212
    %v285 = vunpack.c.l.b16 %v213
    %v286 = vunpack.c.h.b16 %v213
    %v287 = vunpack.c.l.b16 %v214
    %v288 = vunpack.c.h.b16 %v214
    %v289 = vunpack.c.l.b16 %v215
    %v290 = vunpack.c.h.b16 %v215
    %v291 = vunpack.c.l.b16 %v216
    %v292 = vunpack.c.h.b16 %v216
    %v293 = vunpack.c.l.b16 %v217
    %v294 = vunpack.c.h.b16 %v217
    %v295 = vunpack.c.l.b16 %v218
    %v296 = vunpack.c.h.b16 %v218
    %v297 = vunpack.c.l.b16 %v219
    %v298 = vunpack.c.h.b16 %v219
    %v299 = vunpack.c.l.b16 %v220
    %v300 = vunpack.c.h.b16 %v220
    %v301 = vunpack.c.l.b16 %v221
    %v302 = vunpack.c.h.b16 %v221
    %v303 = vunpack.c.l.b16 %v222
    %v304 = vunpack.c.h.b16 %v222
    %v305 = vunpack.c.l.b16 %v223
    %v306 = vunpack.c.h.b16 %v223
    %v307 = vunpack.c.l.b16 %v224
    %v308 = vunpack.c.h.b16 %v224
    %v309 = vunpack.c.l.b16 %v225
    %v310 = vunpack.c.h.b16 %v225
    %v311 = vunpack.c.l.b16 %v226
    %v312 = vunpack.c.h.b16 %v226
    %v313 = vunpack.c.l.b16 %v227
    %v314 = vunpack.c.h.b16 %v227
    %v315 = vunpack.c.l.b16 %v228
    %v316 = vunpack.c.h.b16 %v228
    %v317 = vunpack.c.l.b16 %v229
    %v318 = vunpack.c.h.b16 %v229
    %v319 = vunpack.c.l.b16 %v230
    %v320 = vunpack.c.h.b16 %v230
    %v321 = vunpack.c.l.b16 %v231
    %v322 = vunpack.c.h.b16 %v231
    %v323 = vunpack.c.l.b16 %v232
    %v324 = vunpack.c.h.b16 %v232
    %v325 = vunpack.c.l.b16 %v233
    %v326 = vunpack.c.h.b16 %v233
    %v327 = vunpack.c.l.b16 %v234
    %v328 = vunpack.c.h.b16 %v234
    %v329 = vunpack.c.l.b16 %v235
    %v330 = vunpack.c.h.b16 %v235
    %v331 = vunpack.c.l.b16 %v236
    %v332 = vunpack.c.h.b16 %v236
    %v333 = vunpack.c.l.b16 %v237
    %v334 = vunpack.c.h.b16 %v237
    %v335 = vunpack.c.l.b16 %v238
    %v336 = vunpack.c.h.b16 %v238
    %v337 = vunpack.c.l.b16 %v239
    %v338 = vunpack.c.h.b16 %v239
    %v339 = vunpack.c.l.b16 %v240
    %v340 = vunpack.c.h.b16 %v240
    %v341 = vunpack.c.l.b16 %v241
    %v342 = vunpack.c.h.b16 %v241
    %v343 = vunpack.c.l.b16 %v242
    %v344 = vunpack.c.h.b16 %v242
    %v345 = vpack.c.b16 %v283, %v281
    %v346 = vpack.c.b16 %v284, %v282
    %v347 = vpack.c.b16 %v287, %v285
    %v348 = vpack.c.b16 %v288, %v286
    %v349 = vpack.c.b16 %v291, %v289
    %v350 = vpack.c.b16 %v292, %v290
    %v351 = vpack.c.b16 %v295, %v293
    %v352 = vpack.c.b16 %v296, %v294
    %v353 = vpack.c.b16 %v299, %v297
    %v354 = vpack.c.b16 %v300, %v298
    %v355 = vpack.c.b16 %v303, %v301
    %v356 = vpack.c.b16 %v304, %v302
    %v357 = vpack.c.b16 %v307, %v305
    %v358 = vpack.c.b16 %v308, %v306
    %v359 = vpack.c.b16 %v311, %v309
    %v360 = vpack.c.b16 %v312, %v310
    %v361 = vpack.c.b16 %v315, %v313
    %v362 = vpack.c.b16 %v316, %v314
    %v363 = vpack.c.b16 %v319, %v317
    %v364 = vpack.c.b16 %v320, %v318
    %v365 = vpack.c.b16 %v323, %v321
    %v366 = vpack.c.b16 %v324, %v322
    %v367 = vpack.c.b16 %v327, %v325
    %v368 = vpack.c.b16 %v328, %v326
    %v369 = vpack.c.b16 %v331, %v329
    %v370 = vpack.c.b16 %v332, %v330
    %v371 = vpack.c.b16 %v335, %v333
    %v372 = vpack.c.b16 %v336, %v334
    %v373 = vpack.c.b16 %v339, %v337
    %v374 = vpack.c.b16 %v340, %v338
    %v375 = vpack.c.b16 %v343, %v341
    %v376 = vpack.c.b16 %v344, %v342
    %409 = vmatpush.bf16.msra.mxu0 %v359
    %410 = vmatpush.bf16.msra.mxu0 %v357
    %411 = vmatpush.bf16.msra.mxu0 %v355
    %412 = vmatpush.bf16.msra.mxu0 %v353
    %413 = vmatpush.bf16.msra.mxu0 %v351
    %414 = vmatpush.bf16.msra.mxu0 %v349
    %415 = vmatpush.bf16.msra.mxu0 %v347
    %416 = vmatpush.bf16.msra.mxu0 %v345
    %417 = vmatmul.bf16.gmra.mxu0 %v209
    %v418 = vpop.f32.mrf.mxu0
    %v419 = vadd.f32 %v245, %v418
    %v420 = vpop.f32.mrf.mxu0
    %421 = vdwg.mxu0
    %422 = vmatpush.bf16.msra.mxu0 %v375
    %423 = vmatpush.bf16.msra.mxu0 %v373
    %424 = vmatpush.bf16.msra.mxu0 %v371
    %425 = vmatpush.bf16.msra.mxu0 %v369
    %426 = vmatpush.bf16.msra.mxu0 %v367
    %427 = vmatpush.bf16.msra.mxu0 %v365
    %428 = vmatpush.bf16.msra.mxu0 %v363
    %429 = vmatpush.bf16.msra.mxu0 %v361
    %430 = vmatmul.bf16.gmra.mxu0 %v210
    %v431 = vpop.f32.mrf.mxu0
    %v432 = vadd.f32 %v419, %v431
    %v433 = vpop.f32.mrf.mxu0
    %434 = vdwg.mxu0
    %435 = vmatpush.bf16.msra.mxu0 %v360
    %436 = vmatpush.bf16.msra.mxu0 %v358
    %437 = vmatpush.bf16.msra.mxu0 %v356
    %438 = vmatpush.bf16.msra.mxu0 %v354
    %439 = vmatpush.bf16.msra.mxu0 %v352
    %440 = vmatpush.bf16.msra.mxu0 %v350
    %441 = vmatpush.bf16.msra.mxu0 %v348
    %442 = vmatpush.bf16.msra.mxu0 %v346
    %443 = vmatmul.bf16.gmra.mxu0 %v209
    %v444 = vpop.f32.mrf.mxu0
    %v445 = vadd.f32 %v246, %v444
    %v446 = vpop.f32.mrf.mxu0
    %447 = vdwg.mxu0
    %448 = vmatpush.bf16.msra.mxu0 %v376
    %449 = vmatpush.bf16.msra.mxu0 %v374
    %450 = vmatpush.bf16.msra.mxu0 %v372
    %451 = vmatpush.bf16.msra.mxu0 %v370
    %452 = vmatpush.bf16.msra.mxu0 %v368
    %453 = vmatpush.bf16.msra.mxu0 %v366
    %454 = vmatpush.bf16.msra.mxu0 %v364
    %455 = vmatpush.bf16.msra.mxu0 %v362
    %456 = vmatmul.bf16.gmra.mxu0 %v210
    %v457 = vpop.f32.mrf.mxu0
    %v458 = vadd.f32 %v445, %v457
    %v459 = vpop.f32.mrf.mxu0
    %460 = vdwg.mxu0
    %vm461 = vcmp.gt.f32.partialorder %v432, 0.0
    %vm462 = vcmp.gt.f32.partialorder %v458, 0.0
    %v463 = vmul.f32 %v432, 0.01
    %v464 = vmul.f32 %v458, 0.01
    %v465 = vsel %vm461, %v432, %v463
    %v466 = vsel %vm462, %v458, %v464
    %v467 = vpack.c.bf16 %v465, %v465
    %v468 = vpack.c.bf16 %v466, %v466
    %s469 = scalar_lea.vmem [#allocation8], 256
    %v470 = vld [vmem:[%s469] sm:$0xff]
    %v471 = vld [vmem:[%s469 + $0x8] sm:$0xff]
    %v472 = vld [vmem:[%s469 + $0x10] sm:$0xff]
    %v473 = vld [vmem:[%s469 + $0x18] sm:$0xff]
    %v474 = vld [vmem:[%s469 + $0x20] sm:$0xff]
    %v475 = vld [vmem:[%s469 + $0x28] sm:$0xff]
    %v476 = vld [vmem:[%s469 + $0x30] sm:$0xff]
    %v477 = vld [vmem:[%s469 + $0x38] sm:$0xff]
    %v478 = vld [vmem:[%s469 + $0x40] sm:$0xff]
    %v479 = vld [vmem:[%s469 + $0x48] sm:$0xff]
    %v480 = vld [vmem:[%s469 + $0x50] sm:$0xff]
    %v481 = vld [vmem:[%s469 + $0x58] sm:$0xff]
    %v482 = vld [vmem:[%s469 + $0x60] sm:$0xff]
    %v483 = vld [vmem:[%s469 + $0x68] sm:$0xff]
    %v484 = vld [vmem:[%s469 + $0x70] sm:$0xff]
    %v485 = vld [vmem:[%s469 + $0x78] sm:$0xff]
    %v486 = vld [vmem:[%s469 + $0x80] sm:$0xff]
    %v487 = vld [vmem:[%s469 + $0x88] sm:$0xff]
    %v488 = vld [vmem:[%s469 + $0x90] sm:$0xff]
    %v489 = vld [vmem:[%s469 + $0x98] sm:$0xff]
    %v490 = vld [vmem:[%s469 + $0xa0] sm:$0xff]
    %v491 = vld [vmem:[%s469 + $0xa8] sm:$0xff]
    %v492 = vld [vmem:[%s469 + $0xb0] sm:$0xff]
    %v493 = vld [vmem:[%s469 + $0xb8] sm:$0xff]
    %v494 = vld [vmem:[%s469 + $0xc0] sm:$0xff]
    %v495 = vld [vmem:[%s469 + $0xc8] sm:$0xff]
    %v496 = vld [vmem:[%s469 + $0xd0] sm:$0xff]
    %v497 = vld [vmem:[%s469 + $0xd8] sm:$0xff]
    %v498 = vld [vmem:[%s469 + $0xe0] sm:$0xff]
    %v499 = vld [vmem:[%s469 + $0xe8] sm:$0xff]
    %v500 = vld [vmem:[%s469 + $0xf0] sm:$0xff]
    %v501 = vld [vmem:[%s469 + $0xf8] sm:$0xff]
    %s502 = scalar_lea.vmem [#allocation10], 2
    %v503 = vld [vmem:[%s502] sm:$0x3]
    %v505 = vperm.slane %v503, 0
    %v506 = vperm.slane %v503, 1
    %v541 = vunpack.c.l.b16 %v470
    %v542 = vunpack.c.h.b16 %v470
    %v543 = vunpack.c.l.b16 %v471
    %v544 = vunpack.c.h.b16 %v471
    %v545 = vunpack.c.l.b16 %v472
    %v546 = vunpack.c.h.b16 %v472
    %v547 = vunpack.c.l.b16 %v473
    %v548 = vunpack.c.h.b16 %v473
    %v549 = vunpack.c.l.b16 %v474
    %v550 = vunpack.c.h.b16 %v474
    %v551 = vunpack.c.l.b16 %v475
    %v552 = vunpack.c.h.b16 %v475
    %v553 = vunpack.c.l.b16 %v476
    %v554 = vunpack.c.h.b16 %v476
    %v555 = vunpack.c.l.b16 %v477
    %v556 = vunpack.c.h.b16 %v477
    %v557 = vunpack.c.l.b16 %v478
    %v558 = vunpack.c.h.b16 %v478
    %v559 = vunpack.c.l.b16 %v479
    %v560 = vunpack.c.h.b16 %v479
    %v561 = vunpack.c.l.b16 %v480
    %v562 = vunpack.c.h.b16 %v480
    %v563 = vunpack.c.l.b16 %v481
    %v564 = vunpack.c.h.b16 %v481
    %v565 = vunpack.c.l.b16 %v482
    %v566 = vunpack.c.h.b16 %v482
    %v567 = vunpack.c.l.b16 %v483
    %v568 = vunpack.c.h.b16 %v483
    %v569 = vunpack.c.l.b16 %v484
    %v570 = vunpack.c.h.b16 %v484
    %v571 = vunpack.c.l.b16 %v485
    %v572 = vunpack.c.h.b16 %v485
    %v573 = vunpack.c.l.b16 %v486
    %v574 = vunpack.c.h.b16 %v486
    %v575 = vunpack.c.l.b16 %v487
    %v576 = vunpack.c.h.b16 %v487
    %v577 = vunpack.c.l.b16 %v488
    %v578 = vunpack.c.h.b16 %v488
    %v579 = vunpack.c.l.b16 %v489
    %v580 = vunpack.c.h.b16 %v489
    %v581 = vunpack.c.l.b16 %v490
    %v582 = vunpack.c.h.b16 %v490
    %v583 = vunpack.c.l.b16 %v491
    %v584 = vunpack.c.h.b16 %v491
    %v585 = vunpack.c.l.b16 %v492
    %v586 = vunpack.c.h.b16 %v492
    %v587 = vunpack.c.l.b16 %v493
    %v588 = vunpack.c.h.b16 %v493
    %v589 = vunpack.c.l.b16 %v494
    %v590 = vunpack.c.h.b16 %v494
    %v591 = vunpack.c.l.b16 %v495
    %v592 = vunpack.c.h.b16 %v495
    %v593 = vunpack.c.l.b16 %v496
    %v594 = vunpack.c.h.b16 %v496
    %v595 = vunpack.c.l.b16 %v497
    %v596 = vunpack.c.h.b16 %v497
    %v597 = vunpack.c.l.b16 %v498
    %v598 = vunpack.c.h.b16 %v498
    %v599 = vunpack.c.l.b16 %v499
    %v600 = vunpack.c.h.b16 %v499
    %v601 = vunpack.c.l.b16 %v500
    %v602 = vunpack.c.h.b16 %v500
    %v603 = vunpack.c.l.b16 %v501
    %v604 = vunpack.c.h.b16 %v501
    %v605 = vpack.c.b16 %v543, %v541
    %v606 = vpack.c.b16 %v544, %v542
    %v607 = vpack.c.b16 %v547, %v545
    %v608 = vpack.c.b16 %v548, %v546
    %v609 = vpack.c.b16 %v551, %v549
    %v610 = vpack.c.b16 %v552, %v550
    %v611 = vpack.c.b16 %v555, %v553
    %v612 = vpack.c.b16 %v556, %v554
    %v613 = vpack.c.b16 %v559, %v557
    %v614 = vpack.c.b16 %v560, %v558
    %v615 = vpack.c.b16 %v563, %v561
    %v616 = vpack.c.b16 %v564, %v562
    %v617 = vpack.c.b16 %v567, %v565
    %v618 = vpack.c.b16 %v568, %v566
    %v619 = vpack.c.b16 %v571, %v569
    %v620 = vpack.c.b16 %v572, %v570
    %v621 = vpack.c.b16 %v575, %v573
    %v622 = vpack.c.b16 %v576, %v574
    %v623 = vpack.c.b16 %v579, %v577
    %v624 = vpack.c.b16 %v580, %v578
    %v625 = vpack.c.b16 %v583, %v581
    %v626 = vpack.c.b16 %v584, %v582
    %v627 = vpack.c.b16 %v587, %v585
    %v628 = vpack.c.b16 %v588, %v586
    %v629 = vpack.c.b16 %v591, %v589
    %v630 = vpack.c.b16 %v592, %v590
    %v631 = vpack.c.b16 %v595, %v593
    %v632 = vpack.c.b16 %v596, %v594
    %v633 = vpack.c.b16 %v599, %v597
    %v634 = vpack.c.b16 %v600, %v598
    %v635 = vpack.c.b16 %v603, %v601
    %v636 = vpack.c.b16 %v604, %v602
    %669 = vmatpush.bf16.msra.mxu0 %v619
    %670 = vmatpush.bf16.msra.mxu0 %v617
    %671 = vmatpush.bf16.msra.mxu0 %v615
    %672 = vmatpush.bf16.msra.mxu0 %v613
    %673 = vmatpush.bf16.msra.mxu0 %v611
    %674 = vmatpush.bf16.msra.mxu0 %v609
    %675 = vmatpush.bf16.msra.mxu0 %v607
    %676 = vmatpush.bf16.msra.mxu0 %v605
    %677 = vmatmul.bf16.gmra.mxu0 %v467
    %v678 = vpop.f32.mrf.mxu0
    %v679 = vadd.f32 %v505, %v678
    %v680 = vpop.f32.mrf.mxu0
    %681 = vdwg.mxu0
    %682 = vmatpush.bf16.msra.mxu0 %v635
    %683 = vmatpush.bf16.msra.mxu0 %v633
    %684 = vmatpush.bf16.msra.mxu0 %v631
    %685 = vmatpush.bf16.msra.mxu0 %v629
    %686 = vmatpush.bf16.msra.mxu0 %v627
    %687 = vmatpush.bf16.msra.mxu0 %v625
    %688 = vmatpush.bf16.msra.mxu0 %v623
    %689 = vmatpush.bf16.msra.mxu0 %v621
    %690 = vmatmul.bf16.gmra.mxu0 %v468
    %v691 = vpop.f32.mrf.mxu0
    %v692 = vadd.f32 %v679, %v691
    %v693 = vpop.f32.mrf.mxu0
    %694 = vdwg.mxu0
    %695 = vmatpush.bf16.msra.mxu0 %v620
    %696 = vmatpush.bf16.msra.mxu0 %v618
    %697 = vmatpush.bf16.msra.mxu0 %v616
    %698 = vmatpush.bf16.msra.mxu0 %v614
    %699 = vmatpush.bf16.msra.mxu0 %v612
    %700 = vmatpush.bf16.msra.mxu0 %v610
    %701 = vmatpush.bf16.msra.mxu0 %v608
    %702 = vmatpush.bf16.msra.mxu0 %v606
    %703 = vmatmul.bf16.gmra.mxu0 %v467
    %v704 = vpop.f32.mrf.mxu0
    %v705 = vadd.f32 %v506, %v704
    %v706 = vpop.f32.mrf.mxu0
    %707 = vdwg.mxu0
    %708 = vmatpush.bf16.msra.mxu0 %v636
    %709 = vmatpush.bf16.msra.mxu0 %v634
    %710 = vmatpush.bf16.msra.mxu0 %v632
    %711 = vmatpush.bf16.msra.mxu0 %v630
    %712 = vmatpush.bf16.msra.mxu0 %v628
    %713 = vmatpush.bf16.msra.mxu0 %v626
    %714 = vmatpush.bf16.msra.mxu0 %v624
    %715 = vmatpush.bf16.msra.mxu0 %v622
    %716 = vmatmul.bf16.gmra.mxu0 %v468
    %v717 = vpop.f32.mrf.mxu0
    %v718 = vadd.f32 %v705, %v717
    %v719 = vpop.f32.mrf.mxu0
    %720 = vdwg.mxu0
    %vm721 = vcmp.gt.f32.partialorder %v692, 0.0
    %vm722 = vcmp.gt.f32.partialorder %v718, 0.0
    %v723 = vmul.f32 %v692, 0.01
    %v724 = vmul.f32 %v718, 0.01
    %v725 = vsel %vm721, %v692, %v723
    %v726 = vsel %vm722, %v718, %v724
    %v727 = vpack.c.bf16 %v725, %v725
    %v728 = vpack.c.bf16 %v726, %v726
    %v729 = vld [vmem:[#allocation11] sm:$0xf]
    %v730 = vld [vmem:[#allocation11 + $0x4] sm:$0xf]
    %v731 = vld [vmem:[#allocation11 + $0x8] sm:$0xf]
    %v732 = vld [vmem:[#allocation11 + $0xc] sm:$0xf]
    %v733 = vld [vmem:[#allocation11 + $0x10] sm:$0xf]
    %v734 = vld [vmem:[#allocation11 + $0x14] sm:$0xf]
    %v735 = vld [vmem:[#allocation11 + $0x18] sm:$0xf]
    %v736 = vld [vmem:[#allocation11 + $0x1c] sm:$0xf]
    %v737 = vld [vmem:[#allocation11 + $0x20] sm:$0xf]
    %v738 = vld [vmem:[#allocation11 + $0x24] sm:$0xf]
    %v739 = vld [vmem:[#allocation11 + $0x28] sm:$0xf]
    %v740 = vld [vmem:[#allocation11 + $0x2c] sm:$0xf]
    %v741 = vld [vmem:[#allocation11 + $0x30] sm:$0xf]
    %v742 = vld [vmem:[#allocation11 + $0x34] sm:$0xf]
    %v743 = vld [vmem:[#allocation11 + $0x38] sm:$0xf]
    %v744 = vld [vmem:[#allocation11 + $0x3c] sm:$0xf]
    %v745 = vld [vmem:[#allocation11 + $0x40] sm:$0xf]
    %v746 = vld [vmem:[#allocation11 + $0x44] sm:$0xf]
    %v747 = vld [vmem:[#allocation11 + $0x48] sm:$0xf]
    %v748 = vld [vmem:[#allocation11 + $0x4c] sm:$0xf]
    %v749 = vld [vmem:[#allocation11 + $0x50] sm:$0xf]
    %v750 = vld [vmem:[#allocation11 + $0x54] sm:$0xf]
    %v751 = vld [vmem:[#allocation11 + $0x58] sm:$0xf]
    %v752 = vld [vmem:[#allocation11 + $0x5c] sm:$0xf]
    %v753 = vld [vmem:[#allocation11 + $0x60] sm:$0xf]
    %v754 = vld [vmem:[#allocation11 + $0x64] sm:$0xf]
    %v755 = vld [vmem:[#allocation11 + $0x68] sm:$0xf]
    %v756 = vld [vmem:[#allocation11 + $0x6c] sm:$0xf]
    %v757 = vld [vmem:[#allocation11 + $0x70] sm:$0xf]
    %v758 = vld [vmem:[#allocation11 + $0x74] sm:$0xf]
    %v759 = vld [vmem:[#allocation11 + $0x78] sm:$0xf]
    %v760 = vld [vmem:[#allocation11 + $0x7c] sm:$0xf]
    %v761 = vld [vmem:[%s6] sm:$0x1]
    %v763 = vperm.slane %v761, 0
    %v797 = vunpack.c.l.b16 %v729
    %v798 = vunpack.c.l.b16 %v730
    %v799 = vunpack.c.l.b16 %v731
    %v800 = vunpack.c.l.b16 %v732
    %v801 = vunpack.c.l.b16 %v733
    %v802 = vunpack.c.l.b16 %v734
    %v803 = vunpack.c.l.b16 %v735
    %v804 = vunpack.c.l.b16 %v736
    %v805 = vunpack.c.l.b16 %v737
    %v806 = vunpack.c.l.b16 %v738
    %v807 = vunpack.c.l.b16 %v739
    %v808 = vunpack.c.l.b16 %v740
    %v809 = vunpack.c.l.b16 %v741
    %v810 = vunpack.c.l.b16 %v742
    %v811 = vunpack.c.l.b16 %v743
    %v812 = vunpack.c.l.b16 %v744
    %v813 = vunpack.c.l.b16 %v745
    %v814 = vunpack.c.l.b16 %v746
    %v815 = vunpack.c.l.b16 %v747
    %v816 = vunpack.c.l.b16 %v748
    %v817 = vunpack.c.l.b16 %v749
    %v818 = vunpack.c.l.b16 %v750
    %v819 = vunpack.c.l.b16 %v751
    %v820 = vunpack.c.l.b16 %v752
    %v821 = vunpack.c.l.b16 %v753
    %v822 = vunpack.c.l.b16 %v754
    %v823 = vunpack.c.l.b16 %v755
    %v824 = vunpack.c.l.b16 %v756
    %v825 = vunpack.c.l.b16 %v757
    %v826 = vunpack.c.l.b16 %v758
    %v827 = vunpack.c.l.b16 %v759
    %v828 = vunpack.c.l.b16 %v760
    %v829 = vpack.c.b16 %v798, %v797
    %v830 = vpack.c.b16 %v800, %v799
    %v831 = vpack.c.b16 %v802, %v801
    %v832 = vpack.c.b16 %v804, %v803
    %v833 = vpack.c.b16 %v806, %v805
    %v834 = vpack.c.b16 %v808, %v807
    %v835 = vpack.c.b16 %v810, %v809
    %v836 = vpack.c.b16 %v812, %v811
    %v837 = vpack.c.b16 %v814, %v813
    %v838 = vpack.c.b16 %v816, %v815
    %v839 = vpack.c.b16 %v818, %v817
    %v840 = vpack.c.b16 %v820, %v819
    %v841 = vpack.c.b16 %v822, %v821
    %v842 = vpack.c.b16 %v824, %v823
    %v843 = vpack.c.b16 %v826, %v825
    %v844 = vpack.c.b16 %v828, %v827
    %861 = vmatpush.bf16.msra.mxu0 %v836
    %862 = vmatpush.bf16.msra.mxu0 %v835
    %863 = vmatpush.bf16.msra.mxu0 %v834
    %864 = vmatpush.bf16.msra.mxu0 %v833
    %865 = vmatpush.bf16.msra.mxu0 %v832
    %866 = vmatpush.bf16.msra.mxu0 %v831
    %867 = vmatpush.bf16.msra.mxu0 %v830
    %868 = vmatpush.bf16.msra.mxu0 %v829
    %869 = vmatmul.bf16.gmra.mxu0 %v727
    %v870 = vpop.f32.mrf.mxu0
    %v871 = vadd.f32 %v763, %v870
    %v872 = vpop.f32.mrf.mxu0
    %873 = vdwg.mxu0
    %874 = vmatpush.bf16.msra.mxu0 %v844
    %875 = vmatpush.bf16.msra.mxu0 %v843
    %876 = vmatpush.bf16.msra.mxu0 %v842
    %877 = vmatpush.bf16.msra.mxu0 %v841
    %878 = vmatpush.bf16.msra.mxu0 %v840
    %879 = vmatpush.bf16.msra.mxu0 %v839
    %880 = vmatpush.bf16.msra.mxu0 %v838
    %881 = vmatpush.bf16.msra.mxu0 %v837
    %882 = vmatmul.bf16.gmra.mxu0 %v728
    %v883 = vpop.f32.mrf.mxu0
    %v884 = vadd.f32 %v871, %v883
    %v885 = vpop.f32.mrf.mxu0
    %886 = vdwg.mxu0
    %887 = vst [vmem:[#allocation13] sm:$0xff] %v884
    // Predicated region
    $region54: #{tpu_custom_call.1} parent=1 // pred_check
      _
    $region55: #{tpu_custom_call.1} parent=1 // pred_check_branch
      %889 = sbr.rel (0) target = $region57
    $region56: #{tpu_custom_call.1} parent=1 // pred_region
      %891 = vsyncadd [#allocation4], 0
      %s893 = sshll.u32 [#allocation13], 4
      %s894 = int_to_ptr.vmem [resolvable:$true] %s893
      %s895 = sshll.u32 %s7, 4
      %s896 = int_to_ptr.hbm [resolvable:$true] %s895
      %898 = dma.vmem_to_hbm [thread:$0]  %s894, 128, %s896, [#allocation4]
    $region57: #{tpu_custom_call.1} parent=1 // pred_fallthru
      _
    // Predicated region
    $region58: #{tpu_custom_call.1} parent=1 // pred_check
      _
    $region59: #{tpu_custom_call.1} parent=1 // pred_check_branch
      %900 = sbr.rel (0) target = $region61
    $region60: #{tpu_custom_call.1} parent=1 // pred_region
      %902 = dma.done [#allocation4], 128
    $region61: #{tpu_custom_call.1} parent=1 // pred_fallthru
      _
    %903 = vsyncpa [#allocation3], 1
    %904 = vsyncpa [#allocation6], 1
    %905 = vsyncpa [#allocation9], 1
    %906 = vsyncpa [#allocation12], 1
    %907 = vsyncpa [#allocation4], 1

</llo_original>
